<compile_context>
chip_gen: v6e
topology: v6e:2x2x1
jax: 0.10.0
libtpu: 0.0.40
codegen_flags: <defaults>
</compile_context>

<pallas_src>
import functools

import jax
import jax.numpy as jnp
import numpy as np
from jax.experimental import pallas as pl
from jax.experimental.pallas import tpu as pltpu


def _deepsets_kernel(BB, N_pad, N_valid, H,
                     x_ref, w1_ref, b1_ref, w2cat_ref, bcat_ref,
                     wa2_ref, ba2_ref, wr_ref, br_ref,
                     out_ref):
    D = x_ref.shape[-1]
    # Cast to bf16 in-kernel (avoids an extra wrapper-side HBM pass over x) and flatten
    # the bag block so the per-instance matmuls see BB*N_pad rows at once.
    x = x_ref[...].astype(jnp.bfloat16).reshape(BB * N_pad, D)

    # phi layer 1: Linear -> ReLU   (bf16 operands, f32 accumulation)
    h = jnp.dot(x, w1_ref[...], preferred_element_type=jnp.float32) + b1_ref[...]
    h = jnp.maximum(h, 0.0)                                            # (BB*N_pad, H1) f32

    # Fused phi-layer-2 + attention-hidden matmul: one wide MXU pass, then slice.
    zcat = jnp.dot(h.astype(jnp.bfloat16), w2cat_ref[...],
                   preferred_element_type=jnp.float32) + bcat_ref[...]  # (BB*N_pad, H+Hd) f32
    z = zcat[:, :H]                                                     # phi(x)
    ah = jnp.tanh(zcat[:, H:])                                          # attention hidden

    # Width-1 attention linear as a VPU multiply + lane reduce (no degenerate MXU op).
    Hd = ah.shape[-1]
    ah3 = ah.reshape(BB, N_pad, Hd)
    s = jnp.sum(ah3 * wa2_ref[...].reshape(1, 1, Hd), axis=-1) + ba2_ref[...]   # (BB, N_pad)

    # Mask padded instances out of the softmax (static compare; no-op when N_pad == N).
    if N_valid != N_pad:
        lane = jax.lax.broadcasted_iota(jnp.int32, (BB, N_pad), 1)
        s = jnp.where(lane < N_valid, s, -jnp.inf)

    # Per-bag softmax over instances; approx reciprocal runs on the EUP slot (~free).
    m = jnp.max(s, axis=-1, keepdims=True)
    e = jnp.exp(s - m)
    denom = jnp.sum(e, axis=-1, keepdims=True)
    a = e * pl.reciprocal(denom, approx=True)                           # (BB, N_pad) f32

    # pooled = A^T @ phi(x) per bag, as multiply + sublane reduce (no MXU, no transpose).
    z3 = z.reshape(BB, N_pad, H)
    pooled = jnp.sum(a[:, :, None] * z3, axis=1)                        # (BB, H) f32

    # rho head
    out = jnp.dot(pooled.astype(jnp.bfloat16), wr_ref[...],
                  preferred_element_type=jnp.float32) + br_ref[...]     # (BB, C) f32

    # Single packed, lane-contiguous output: [logits | attention weights].
    out_ref[...] = jnp.concatenate([out, a], axis=-1)                   # (BB, C + N_pad)


def _vmem_capacity_bytes():
    """Generation-aware VMEM capacity (v7x: 64 MiB/TC, v5e/v6e: 128 MiB)."""
    try:
        info = pltpu.get_tpu_info()
        cap = getattr(info, "vmem_capacity_bytes", None)
        if cap:
            return int(cap)
    except Exception:
        pass
    return 64 * 1024 * 1024   # conservative default (v7x per-TC)


def _choose_bag_block(B, N_pad, rows_target):
    """Bags per grid step: full batch if it fits; otherwise a multiple of 8 that divides B
    (no batch pad) and, when possible, yields an even step count (v7x dual-TC balance)."""
    bb_cap = max(1, rows_target // max(N_pad, 1))
    if bb_cap >= B:
        return B                                   # whole batch resident: block == full extent
    bb_cap = max(8, (bb_cap // 8) * 8)
    divisors = [bb for bb in range(bb_cap, 7, -8) if B % bb == 0]
    even = [bb for bb in divisors if (B // bb) % 2 == 0]
    if even:
        return even[0]
    if divisors:
        return divisors[0]
    # No aligned divisor: pad the batch, keeping the step count even when > 1.
    steps = -(-B // bb_cap)
    if steps > 1 and steps % 2 == 1:
        steps += 1
    bb = -(-B // steps)
    return max(8, ((bb + 7) // 8) * 8)


def deepsets_forward(x, params, *, rows_per_block=None):
    """x: (B, N, D) float32. Returns (out (B,1,C), A (B,N,1)) like DeepSets.forward."""
    (w1, b1, w2, b2, wa1, ba1, wa2, ba2, wr, br) = params
    B, N, D = x.shape
    H1 = w1.shape[1]
    H = w2.shape[1]
    Hd = wa1.shape[1]
    C = wr.shape[1]

    # Instance axis padded to a multiple of 8 so in-kernel reshapes are layout no-ops.
    N_pad = ((N + 7) // 8) * 8

    # --- VMEM budget -> instance rows per grid step -------------------------------------
    vmem_limit = min(int(_vmem_capacity_bytes() * 0.75), 100 * 1024 * 1024)
    vmem_limit = max(vmem_limit, 32 * 1024 * 1024)
    block_budget = vmem_limit // 2                      # headroom for weights/outputs/scratch
    bytes_per_row = (
        2 * 4 * D          # double-buffered f32 x input block
        + 2 * D            # bf16 copy of x
        + 6 * H1           # h: f32 + bf16
        + 4 * (H + Hd)     # fused zcat (f32)
        + 4 * Hd           # tanh output
        + 4 * H            # attention-weighted z temporary
    )
    rows_target = max(1024, min(16384, int(block_budget // (bytes_per_row * 1.5))))
    if rows_per_block is not None:
        rows_target = int(rows_per_block)

    BB = _choose_bag_block(B, N_pad, rows_target)
    grid_steps = -(-B // BB)
    B_pad = grid_steps * BB

    # Pad only when unavoidable (keeps the common case free of an extra HBM pass over x).
    pad_b, pad_n = B_pad - B, N_pad - N
    if pad_b or pad_n:
        x = jnp.pad(x, ((0, pad_b), (0, pad_n), (0, 0)))   # explicit zero padding

    # --- weight prep: fuse phi layer 2 with the attention hidden layer (compose in f32) ---
    w1b = w1.astype(jnp.bfloat16)
    w2a = w2 @ wa1                                   # (H1, Hd) f32
    b2a = b2 @ wa1 + ba1                             # (1, Hd)  f32
    w2cat = jnp.concatenate([w2, w2a], axis=1).astype(jnp.bfloat16)   # (H1, H+Hd)
    bcat = jnp.concatenate([b2, b2a], axis=1)                          # (1, H+Hd) f32
    wrb = wr.astype(jnp.bfloat16)
    wa2_row = wa2.reshape(1, Hd)                     # used element-wise, kept f32

    def full(shape):
        nd = len(shape)
        return pl.BlockSpec(shape, lambda b, nd=nd: (0,) * nd)   # VMEM-resident constants

    kernel = functools.partial(_deepsets_kernel, BB, N_pad, N, H)

    packed = pl.pallas_call(
        kernel,
        grid=(grid_steps,),
        in_specs=[
            pl.BlockSpec((BB, N_pad, D), lambda b: (b, 0, 0)),   # BB bags per step (f32)
            full((D, H1)), full((1, H1)),                        # phi layer 1
            full((H1, H + Hd)), full((1, H + Hd)),               # fused phi2 + attn hidden
            full((1, Hd)), full((1, 1)),                         # attention layer 2 (row) + bias
            full((H, C)), full((1, C)),                          # rho
        ],
        out_specs=pl.BlockSpec((BB, C + N_pad), lambda b: (b, 0)),
        out_shape=jax.ShapeDtypeStruct((B_pad, C + N_pad), jnp.float32),
        compiler_params=pltpu.CompilerParams(
            dimension_semantics=("parallel",),       # batch blocks split across TCs on v7x
            vmem_limit_bytes=vmem_limit,             # raise v5e's 16 MiB default, cap on v7x
        ),
    )(x, w1b, b1, w2cat, bcat, wa2_row, ba2, wrb, br)

    out = packed[:B, :C].reshape(B, 1, C)
    A = packed[:B, C:C + N].reshape(B, N, 1)
    return out, A


def deepsets_reference(x, params):
    """Pure-JAX f32 reference of the same forward pass (for correctness check)."""
    (w1, b1, w2, b2, wa1, ba1, wa2, ba2, wr, br) = params
    h = jnp.maximum(jnp.einsum('bnd,dh->bnh', x, w1) + b1, 0.0)
    z = jnp.einsum('bnh,hk->bnk', h, w2) + b2                     # phi(x): (B, N, H)
    ah = jnp.tanh(jnp.einsum('bnk,kj->bnj', z, wa1) + ba1)
    s = jnp.einsum('bnj,jo->bno', ah, wa2) + ba2                  # (B, N, 1)
    a = jax.nn.softmax(s, axis=1)                                 # softmax over instances
    pooled = jnp.einsum('bno,bnk->bok', a, z)                     # (B, 1, H)
    out = jnp.einsum('bok,kc->boc', pooled, wr) + br              # (B, 1, C)
    return out, a


def init_params(key, D, H1, H, C):
    Hd = H // 3
    ks = jax.random.split(key, 10)

    def lin(kw, fan_in, fan_out):
        scale = 1.0 / np.sqrt(fan_in)
        return jax.random.uniform(kw, (fan_in, fan_out), jnp.float32, -scale, scale)

    w1 = lin(ks[0], D, H1);  b1 = jax.random.uniform(ks[1], (1, H1), jnp.float32, -0.1, 0.1)
    w2 = lin(ks[2], H1, H);  b2 = jax.random.uniform(ks[3], (1, H), jnp.float32, -0.1, 0.1)
    wa1 = lin(ks[4], H, Hd); ba1 = jax.random.uniform(ks[5], (1, Hd), jnp.float32, -0.1, 0.1)
    wa2 = lin(ks[6], Hd, 1); ba2 = jax.random.uniform(ks[7], (1, 1), jnp.float32, -0.1, 0.1)
    wr = lin(ks[8], H, C);   br = jax.random.uniform(ks[9], (1, C), jnp.float32, -0.1, 0.1)
    return (w1, b1, w2, b2, wa1, ba1, wa2, ba2, wr, br)


if __name__ == "__main__":
    def run_case(B, N, D, H1, H, C, rows_per_block=None, seed=0):
        key = jax.random.PRNGKey(seed)
        kx, kp = jax.random.split(key)
        x = jax.random.normal(kx, (B, N, D), dtype=jnp.float32)
        params = init_params(kp, D, H1, H, C)

        out, A = deepsets_forward(x, params, rows_per_block=rows_per_block)
        out = jax.block_until_ready(out)
        A = jax.block_until_ready(A)

        out_ref, A_ref = deepsets_reference(x, params)
        assert out.shape == (B, 1, C) and A.shape == (B, N, 1)
        # bf16 matmul operands (f32 accumulation) + fused W2/Wa1 -> relaxed tolerance.
        np.testing.assert_allclose(np.asarray(out), np.asarray(out_ref), rtol=5e-2, atol=2e-2)
        np.testing.assert_allclose(np.asarray(A), np.asarray(A_ref), rtol=5e-2, atol=2e-2)

    # Small shapes consistent with the module: 2 bags x 8 instances x 32-dim embeddings,
    # phi hidden 64 -> last_hidden_size 48 (attention hidden 48//3 = 16), rho output 4.
    run_case(B=2, N=8, D=32, H1=64, H=48, C=4)
    # Whole-batch single block (BB == B == 40), no padding, no wrapper HBM pass over x.
    run_case(B=40, N=16, D=32, H1=64, H=48, C=4)
    # Force a multi-step grid (rows_per_block=256 -> BB=16 -> 4 even steps, divides B):
    # exercises batch tiling, even-step balance and the packed-output path.
    run_case(B=64, N=16, D=32, H1=64, H=48, C=4, rows_per_block=256)
    # Instance count not a multiple of 8: pad N 10->16 and mask pad instances in softmax.
    run_case(B=6, N=10, D=32, H1=64, H=48, C=4)

    print("KERNEL_OK")
</pallas_src>

<mosaic_0001>
module attributes {stable_mosaic.version = 11 : i64} {
  func.func @_deepsets_kernel(%arg0: i32, %arg1: memref<2x8x32xf32, #tpu.memory_space<vmem>>, %arg2: memref<32x64xbf16, #tpu.memory_space<vmem>>, %arg3: memref<1x64xf32, #tpu.memory_space<vmem>>, %arg4: memref<64x64xbf16, #tpu.memory_space<vmem>>, %arg5: memref<1x64xf32, #tpu.memory_space<vmem>>, %arg6: memref<1x16xf32, #tpu.memory_space<vmem>>, %arg7: memref<1x1xf32, #tpu.memory_space<vmem>>, %arg8: memref<48x4xbf16, #tpu.memory_space<vmem>>, %arg9: memref<1x4xf32, #tpu.memory_space<vmem>>, %arg10: memref<2x12xf32, #tpu.memory_space<vmem>>) attributes {dimension_semantics = [#tpu.dimension_semantics<parallel>], iteration_bounds = array<i64: 1>, scalar_prefetch = 0 : i64, scratch_operands = 0 : i64, tpu.core_type = #tpu.core_type<tc>, window_params = [{transform_indices = @transform_0, window_bounds = array<i64: 2, 8, 32>}, {pipeline_mode = #tpu.pipeline_mode<synchronous>, transform_indices = @transform_1, window_bounds = array<i64: 32, 64>}, {pipeline_mode = #tpu.pipeline_mode<synchronous>, transform_indices = @transform_2, window_bounds = array<i64: 1, 64>}, {pipeline_mode = #tpu.pipeline_mode<synchronous>, transform_indices = @transform_3, window_bounds = array<i64: 64, 64>}, {pipeline_mode = #tpu.pipeline_mode<synchronous>, transform_indices = @transform_4, window_bounds = array<i64: 1, 64>}, {pipeline_mode = #tpu.pipeline_mode<synchronous>, transform_indices = @transform_5, window_bounds = array<i64: 1, 16>}, {pipeline_mode = #tpu.pipeline_mode<synchronous>, transform_indices = @transform_6, window_bounds = array<i64: 1, 1>}, {pipeline_mode = #tpu.pipeline_mode<synchronous>, transform_indices = @transform_7, window_bounds = array<i64: 48, 4>}, {pipeline_mode = #tpu.pipeline_mode<synchronous>, transform_indices = @transform_8, window_bounds = array<i64: 1, 4>}, {transform_indices = @transform_9, window_bounds = array<i64: 2, 12>}]} {
    %c0 = arith.constant 0 : index
    %c0_0 = arith.constant 0 : index
    %c0_1 = arith.constant 0 : index
    %0 = vector.load %arg1[%c0, %c0_0, %c0_1] : memref<2x8x32xf32, #tpu.memory_space<vmem>>, vector<2x8x32xf32>
    %1 = arith.truncf %0 : vector<2x8x32xf32> to vector<2x8x32xbf16>
    %2 = vector.shape_cast %1 : vector<2x8x32xbf16> to vector<16x32xbf16>
    %c0_2 = arith.constant 0 : index
    %c0_3 = arith.constant 0 : index
    %3 = vector.load %arg2[%c0_2, %c0_3] : memref<32x64xbf16, #tpu.memory_space<vmem>>, vector<32x64xbf16>
    %cst = arith.constant dense<0.000000e+00> : vector<16x64xf32>
    %4 = tpu.matmul %2, %3, %cst {dimension_numbers = #tpu.dot_dimension_numbers<[1], [0], [0], [1], [0, 0, 1, 1], [], []>} : vector<16x32xbf16>, vector<32x64xbf16>, vector<16x64xf32> -> vector<16x64xf32>
    %c0_4 = arith.constant 0 : index
    %c0_5 = arith.constant 0 : index
    %5 = vector.load %arg3[%c0_4, %c0_5] : memref<1x64xf32, #tpu.memory_space<vmem>>, vector<1x64xf32>
    %6 = vector.broadcast %5 : vector<1x64xf32> to vector<16x64xf32>
    %7 = arith.addf %4, %6 : vector<16x64xf32>
    %cst_6 = arith.constant 0.000000e+00 : f32
    %8 = vector.broadcast %cst_6 : f32 to vector<16x64xf32>
    %9 = arith.maximumf %7, %8 : vector<16x64xf32>
    %10 = arith.truncf %9 : vector<16x64xf32> to vector<16x64xbf16>
    %c0_7 = arith.constant 0 : index
    %c0_8 = arith.constant 0 : index
    %11 = vector.load %arg4[%c0_7, %c0_8] : memref<64x64xbf16, #tpu.memory_space<vmem>>, vector<64x64xbf16>
    %cst_9 = arith.constant dense<0.000000e+00> : vector<16x64xf32>
    %12 = tpu.matmul %10, %11, %cst_9 {dimension_numbers = #tpu.dot_dimension_numbers<[1], [0], [0], [1], [0, 0, 1, 1], [], []>} : vector<16x64xbf16>, vector<64x64xbf16>, vector<16x64xf32> -> vector<16x64xf32>
    %c0_10 = arith.constant 0 : index
    %c0_11 = arith.constant 0 : index
    %13 = vector.load %arg5[%c0_10, %c0_11] : memref<1x64xf32, #tpu.memory_space<vmem>>, vector<1x64xf32>
    %14 = vector.broadcast %13 : vector<1x64xf32> to vector<16x64xf32>
    %15 = arith.addf %12, %14 : vector<16x64xf32>
    %16 = vector.extract_strided_slice %15 {offsets = [0, 0], sizes = [16, 48], strides = [1, 1]} : vector<16x64xf32> to vector<16x48xf32>
    %17 = vector.extract_strided_slice %15 {offsets = [0, 48], sizes = [16, 16], strides = [1, 1]} : vector<16x64xf32> to vector<16x16xf32>
    %18 = math.tanh %17 : vector<16x16xf32>
    %19 = vector.shape_cast %18 : vector<16x16xf32> to vector<2x8x16xf32>
    %c0_12 = arith.constant 0 : index
    %c0_13 = arith.constant 0 : index
    %20 = vector.load %arg6[%c0_12, %c0_13] : memref<1x16xf32, #tpu.memory_space<vmem>>, vector<1x16xf32>
    %21 = vector.shape_cast %20 : vector<1x16xf32> to vector<1x1x16xf32>
    %22 = vector.broadcast %21 : vector<1x1x16xf32> to vector<2x8x16xf32>
    %23 = arith.mulf %19, %22 : vector<2x8x16xf32>
    %cst_14 = arith.constant dense<0.000000e+00> : vector<2x8xf32>
    %24 = vector.multi_reduction <add>, %23, %cst_14 [2] : vector<2x8x16xf32> to vector<2x8xf32>
    %c0_15 = arith.constant 0 : index
    %c0_16 = arith.constant 0 : index
    %25 = vector.load %arg7[%c0_15, %c0_16] : memref<1x1xf32, #tpu.memory_space<vmem>>, vector<1x1xf32>
    %26 = vector.broadcast %25 : vector<1x1xf32> to vector<2x8xf32>
    %27 = arith.addf %24, %26 : vector<2x8xf32>
    %cst_17 = arith.constant dense<0xFF800000> : vector<2xf32>
    %28 = vector.multi_reduction <maximumf>, %27, %cst_17 [1] : vector<2x8xf32> to vector<2xf32>
    %29 = vector.shape_cast %28 : vector<2xf32> to vector<2x1xf32>
    %30 = vector.broadcast %29 : vector<2x1xf32> to vector<2x8xf32>
    %31 = arith.subf %27, %30 : vector<2x8xf32>
    %32 = math.exp %31 : vector<2x8xf32>
    %cst_18 = arith.constant dense<0.000000e+00> : vector<2xf32>
    %33 = vector.multi_reduction <add>, %32, %cst_18 [1] : vector<2x8xf32> to vector<2xf32>
    %34 = vector.shape_cast %33 : vector<2xf32> to vector<2x1xf32>
    %35 = tpu.reciprocal %34 {approx = true} : vector<2x1xf32> -> vector<2x1xf32>
    %36 = vector.broadcast %35 : vector<2x1xf32> to vector<2x8xf32>
    %37 = arith.mulf %32, %36 : vector<2x8xf32>
    %38 = vector.shape_cast %16 : vector<16x48xf32> to vector<2x8x48xf32>
    %39 = vector.shape_cast %37 : vector<2x8xf32> to vector<2x8x1xf32>
    %40 = vector.broadcast %39 : vector<2x8x1xf32> to vector<2x8x48xf32>
    %41 = arith.mulf %40, %38 : vector<2x8x48xf32>
    %cst_19 = arith.constant dense<0.000000e+00> : vector<2x48xf32>
    %42 = vector.multi_reduction <add>, %41, %cst_19 [1] : vector<2x8x48xf32> to vector<2x48xf32>
    %43 = arith.truncf %42 : vector<2x48xf32> to vector<2x48xbf16>
    %c0_20 = arith.constant 0 : index
    %c0_21 = arith.constant 0 : index
    %44 = vector.load %arg8[%c0_20, %c0_21] : memref<48x4xbf16, #tpu.memory_space<vmem>>, vector<48x4xbf16>
    %cst_22 = arith.constant dense<0.000000e+00> : vector<2x4xf32>
    %45 = tpu.matmul %43, %44, %cst_22 {dimension_numbers = #tpu.dot_dimension_numbers<[1], [0], [0], [1], [0, 0, 1, 1], [], []>} : vector<2x48xbf16>, vector<48x4xbf16>, vector<2x4xf32> -> vector<2x4xf32>
    %c0_23 = arith.constant 0 : index
    %c0_24 = arith.constant 0 : index
    %46 = vector.load %arg9[%c0_23, %c0_24] : memref<1x4xf32, #tpu.memory_space<vmem>>, vector<1x4xf32>
    %47 = vector.broadcast %46 : vector<1x4xf32> to vector<2x4xf32>
    %48 = arith.addf %45, %47 : vector<2x4xf32>
    %49 = tpu.concatenate %48, %37 in 1 : vector<2x4xf32>, vector<2x8xf32> -> vector<2x12xf32>
    %c0_25 = arith.constant 0 : index
    %c0_26 = arith.constant 0 : index
    %50 = vector.load %arg10[%c0_25, %c0_26] : memref<2x12xf32, #tpu.memory_space<vmem>>, vector<2x12xf32>
    tpu.vector_store %arg10[%c0_25, %c0_26], %49 {strides = array<i32>} : memref<2x12xf32, #tpu.memory_space<vmem>>, vector<2x12xf32>,
    return
  }
  func.func @transform_0(%arg0: i32) -> (i32, i32, i32) {
    %c0_i32 = arith.constant 0 : i32
    %c0_i32_0 = arith.constant 0 : i32
    %c0_i32_1 = arith.constant 0 : i32
    return %arg0, %c0_i32, %c0_i32_0 : i32, i32, i32
  }
  func.func @transform_1(%arg0: i32) -> (i32, i32) {
    %c0_i32 = arith.constant 0 : i32
    %c0_i32_0 = arith.constant 0 : i32
    %c0_i32_1 = arith.constant 0 : i32
    return %c0_i32, %c0_i32_0 : i32, i32
  }
  func.func @transform_2(%arg0: i32) -> (i32, i32) {
    %c0_i32 = arith.constant 0 : i32
    %c0_i32_0 = arith.constant 0 : i32
    %c0_i32_1 = arith.constant 0 : i32
    return %c0_i32, %c0_i32_0 : i32, i32
  }
  func.func @transform_3(%arg0: i32) -> (i32, i32) {
    %c0_i32 = arith.constant 0 : i32
    %c0_i32_0 = arith.constant 0 : i32
    %c0_i32_1 = arith.constant 0 : i32
    return %c0_i32, %c0_i32_0 : i32, i32
  }
  func.func @transform_4(%arg0: i32) -> (i32, i32) {
    %c0_i32 = arith.constant 0 : i32
    %c0_i32_0 = arith.constant 0 : i32
    %c0_i32_1 = arith.constant 0 : i32
    return %c0_i32, %c0_i32_0 : i32, i32
  }
  func.func @transform_5(%arg0: i32) -> (i32, i32) {
    %c0_i32 = arith.constant 0 : i32
    %c0_i32_0 = arith.constant 0 : i32
    %c0_i32_1 = arith.constant 0 : i32
    return %c0_i32, %c0_i32_0 : i32, i32
  }
  func.func @transform_6(%arg0: i32) -> (i32, i32) {
    %c0_i32 = arith.constant 0 : i32
    %c0_i32_0 = arith.constant 0 : i32
    %c0_i32_1 = arith.constant 0 : i32
    return %c0_i32, %c0_i32_0 : i32, i32
  }
  func.func @transform_7(%arg0: i32) -> (i32, i32) {
    %c0_i32 = arith.constant 0 : i32
    %c0_i32_0 = arith.constant 0 : i32
    %c0_i32_1 = arith.constant 0 : i32
    return %c0_i32, %c0_i32_0 : i32, i32
  }
  func.func @transform_8(%arg0: i32) -> (i32, i32) {
    %c0_i32 = arith.constant 0 : i32
    %c0_i32_0 = arith.constant 0 : i32
    %c0_i32_1 = arith.constant 0 : i32
    return %c0_i32, %c0_i32_0 : i32, i32
  }
  func.func @transform_9(%arg0: i32) -> (i32, i32) {
    %c0_i32 = arith.constant 0 : i32
    %c0_i32_0 = arith.constant 0 : i32
    return %arg0, %c0_i32 : i32, i32
  }
}

</mosaic_0001>

<llo_original>
// kernel: tpu_custom_call.1
$region0: #{tpu_custom_call.1}
  #allocation0 [shape = 'u32[]', space=smem, size = 0x4, offset = 0x4, fixed_abs, tag = 'smem constant byte address 0x4 - core index']
  #allocation1 [shape = 'u32[144,128]{1,0:T(1,128)}', space=vmem, size = 0x12000, scoped, tag = 'internal scratch']
  #allocation2 [shape = 'f32[1,1]{1,0:T(1,128)S(1)}', space=vmem, size = 0x200, scoped, tag = 'scoped memory for tpu_custom_call.1']
  %s0 = inlined_call_operand.hbm [shape: f32[2,8,32], index: 0, kind: input, shape index: {}]
  %s1 = inlined_call_operand.hbm [shape: bf16[32,64], index: 1, kind: input, shape index: {}]
  %s2 = inlined_call_operand.vmem [shape: f32[1,64], index: 2, kind: input, shape index: {}]
  %s3 = inlined_call_operand.vmem [shape: bf16[64,64], index: 3, kind: input, shape index: {}]
  %s4 = inlined_call_operand.hbm [shape: f32[1,64], index: 4, kind: input, shape index: {}]
  %s5 = inlined_call_operand.vmem [shape: f32[1,16], index: 5, kind: input, shape index: {}]
  %s6 = inlined_call_operand.<no memory space> [shape: f32[1,1], index: 6, kind: input, shape index: {}]
  %s7 = inlined_call_operand.vmem [shape: bf16[48,4], index: 7, kind: input, shape index: {}]
  %s8 = inlined_call_operand.vmem [shape: f32[1,4], index: 8, kind: input, shape index: {}]
  %s9 = inlined_call_operand.hbm [shape: f32[2,12], index: 9, kind: output, shape index: {}]
  %s10 = sld [smem:[#allocation0]]
  $region58: #{tpu_custom_call.1} parent=0
    _
  %s12 = ssub.s32 1, %s10
  %s13 = scalar_select 0, %s12, %s10
  %v14 = vstv %s6
  %15 = vst [vmem:[#allocation2] sm:$0x1] %v14
  $region1: #{tpu_custom_call.1} parent=0
    #allocation3 [shape = 'u8[8192]{0}', space=vmem, size = 0x2000, scoped, tag = 'input window, operand 0, single buffered']
    #allocation4 [shape = 's32[1]{0}', space=sflag, size = 0x4, scoped, tag = 'scoped memory for tpu_custom_call.1']
    #allocation5 [shape = 's32[1]{0}', space=sflag, size = 0x4, scoped, tag = 'scoped memory for tpu_custom_call.1']
    #allocation6 [shape = 'u8[8192]{0}', space=vmem, size = 0x2000, scoped, tag = 'input window, operand 1, single buffered']
    #allocation7 [shape = 's32[1]{0}', space=sflag, size = 0x4, scoped, tag = 'scoped memory for tpu_custom_call.1']
    #allocation8 [shape = 'u8[512]{0}', space=vmem, size = 0x400, scoped, tag = 'input window, operand 4, single buffered']
    #allocation9 [shape = 'u8[1024]{0}', space=vmem, size = 0x400, scoped, tag = 'output window, operand 0, single buffered']
    %16 = vsyncpa [#allocation4], 0
    %17 = vsyncpa [#allocation7], 0
    %18 = vsyncpa [#allocation5], 0
    // Predicated region
    $region2: #{tpu_custom_call.1} parent=1 // pred_check
      _
    $region3: #{tpu_custom_call.1} parent=1 // pred_check_branch
      %20 = sbr.rel (0) target = $region5
    $region4: #{tpu_custom_call.1} parent=1 // pred_region
      %s22 = ssub.s32 256, 256
      %23 = vsyncadd [#allocation4], %s22
      %s24 = sshll.u32 [#allocation3], 4
      %s25 = int_to_ptr.vmem [resolvable:$true] %s24
      %30 = dma.hbm_to_vmem [thread:$0]  %s0, 256, %s25, [#allocation4], 128, 128, 8
    $region5: #{tpu_custom_call.1} parent=1 // pred_fallthru
      _
    // Predicated region
    $region6: #{tpu_custom_call.1} parent=1 // pred_check
      _
    $region7: #{tpu_custom_call.1} parent=1 // pred_check_branch
      %32 = sbr.rel (0) target = $region9
    $region8: #{tpu_custom_call.1} parent=1 // pred_region
      %s34 = ssub.s32 256, 256
      %35 = vsyncadd [#allocation7], %s34
      %s36 = sshll.u32 [#allocation6], 4
      %s37 = int_to_ptr.vmem [resolvable:$true] %s36
      %42 = dma.hbm_to_vmem [thread:$0]  %s1, 256, %s37, [#allocation7], 64, 64, 4
    $region9: #{tpu_custom_call.1} parent=1 // pred_fallthru
      _
    // Predicated region
    $region10: #{tpu_custom_call.1} parent=1 // pred_check
      _
    $region11: #{tpu_custom_call.1} parent=1 // pred_check_branch
      %44 = sbr.rel (0) target = $region13
    $region12: #{tpu_custom_call.1} parent=1 // pred_region
      _
    $region13: #{tpu_custom_call.1} parent=1 // pred_fallthru
      _
    // Predicated region
    $region14: #{tpu_custom_call.1} parent=1 // pred_check
      _
    $region15: #{tpu_custom_call.1} parent=1 // pred_check_branch
      %46 = sbr.rel (0) target = $region17
    $region16: #{tpu_custom_call.1} parent=1 // pred_region
      _
    $region17: #{tpu_custom_call.1} parent=1 // pred_fallthru
      _
    // Predicated region
    $region18: #{tpu_custom_call.1} parent=1 // pred_check
      _
    $region19: #{tpu_custom_call.1} parent=1 // pred_check_branch
      %48 = sbr.rel (0) target = $region21
    $region20: #{tpu_custom_call.1} parent=1 // pred_region
      %s50 = ssub.s32 16, 16
      %51 = vsyncadd [#allocation7], %s50
      %s53 = sshll.u32 [#allocation8], 4
      %s54 = int_to_ptr.vmem [resolvable:$true] %s53
      %56 = dma.hbm_to_vmem [thread:$0]  %s4, 16, %s54, [#allocation7]
    $region21: #{tpu_custom_call.1} parent=1 // pred_fallthru
      _
    // Predicated region
    $region22: #{tpu_custom_call.1} parent=1 // pred_check
      _
    $region23: #{tpu_custom_call.1} parent=1 // pred_check_branch
      %58 = sbr.rel (0) target = $region25
    $region24: #{tpu_custom_call.1} parent=1 // pred_region
      _
    $region25: #{tpu_custom_call.1} parent=1 // pred_fallthru
      _
    // Predicated region
    $region26: #{tpu_custom_call.1} parent=1 // pred_check
      _
    $region27: #{tpu_custom_call.1} parent=1 // pred_check_branch
      %60 = sbr.rel (0) target = $region29
    $region28: #{tpu_custom_call.1} parent=1 // pred_region
      _
    $region29: #{tpu_custom_call.1} parent=1 // pred_fallthru
      _
    // Predicated region
    $region30: #{tpu_custom_call.1} parent=1 // pred_check
      _
    $region31: #{tpu_custom_call.1} parent=1 // pred_check_branch
      %62 = sbr.rel (0) target = $region33
    $region32: #{tpu_custom_call.1} parent=1 // pred_region
      _
    $region33: #{tpu_custom_call.1} parent=1 // pred_fallthru
      _
    // Predicated region
    $region34: #{tpu_custom_call.1} parent=1 // pred_check
      _
    $region35: #{tpu_custom_call.1} parent=1 // pred_check_branch
      %64 = sbr.rel (0) target = $region37
    $region36: #{tpu_custom_call.1} parent=1 // pred_region
      _
    $region37: #{tpu_custom_call.1} parent=1 // pred_fallthru
      _
    // Predicated region
    $region38: #{tpu_custom_call.1} parent=1 // pred_check
      _
    $region39: #{tpu_custom_call.1} parent=1 // pred_check_branch
      %66 = sbr.rel (0) target = $region41
    $region40: #{tpu_custom_call.1} parent=1 // pred_region
      %67 = dma.done [#allocation4], 256
    $region41: #{tpu_custom_call.1} parent=1 // pred_fallthru
      _
    // Predicated region
    $region42: #{tpu_custom_call.1} parent=1 // pred_check
      _
    $region43: #{tpu_custom_call.1} parent=1 // pred_check_branch
      %69 = sbr.rel (0) target = $region45
    $region44: #{tpu_custom_call.1} parent=1 // pred_region
      %70 = dma.done [#allocation7], 256
    $region45: #{tpu_custom_call.1} parent=1 // pred_fallthru
      _
    // Predicated region
    $region46: #{tpu_custom_call.1} parent=1 // pred_check
      _
    $region47: #{tpu_custom_call.1} parent=1 // pred_check_branch
      %72 = sbr.rel (0) target = $region49
    $region48: #{tpu_custom_call.1} parent=1 // pred_region
      %73 = dma.done [#allocation7], 16
    $region49: #{tpu_custom_call.1} parent=1 // pred_fallthru
      _
    %v75 = vld [vmem:[#allocation3] sm:$0xff]
    %v76 = vld [vmem:[#allocation3 + $0x8] sm:$0xff]
    %v77 = vpack.c.bf16 %v75, %v75
    %v78 = vpack.c.bf16 %v76, %v76
    %v79 = vld [vmem:[#allocation6] sm:$0xf]
    %v80 = vld [vmem:[#allocation6 + $0x4] sm:$0xf]
    %v81 = vld [vmem:[#allocation6 + $0x8] sm:$0xf]
    %v82 = vld [vmem:[#allocation6 + $0xc] sm:$0xf]
    %v83 = vld [vmem:[%s2] sm:$0x1]
    %v85 = vlaneseq
    %v86 = vshrl.u32 %v85, 7
    %v87 = vsub.s32 0, %v86
    %v88 = vrot.slane %v83, %v87
    %v92 = vunpack.c.l.b16 %v77
    %v93 = vunpack.c.l.b16 %v78
    %v94 = vpack.c.b16 %v93, %v92
    %v99 = vunpack.c.l.b16 %v79
    %v100 = vunpack.c.l.b16 %v80
    %v101 = vunpack.c.l.b16 %v81
    %v102 = vunpack.c.l.b16 %v82
    %v103 = vpack.c.b16 %v100, %v99
    %v104 = vpack.c.b16 %v102, %v101
    %vm107 = vcmask 261120
    %v109 = vsel %vm107, %v94, 0
    %111 = vmatprep.subr.bf16.mxu0 0
    %112 = vmatpush1.bf16.msra.mxu0 0
    %113 = vmatprep.subr.bf16.mxu0 0
    %114 = vmatpush1.bf16.msra.mxu0 0
    %115 = vmatprep.subr.bf16.mxu0 0
    %116 = vmatpush1.bf16.msra.mxu0 0
    %117 = vmatprep.subr.bf16.mxu0 0
    %118 = vmatpush1.bf16.msra.mxu0 0
    %119 = vmatprep.subr.bf16.mxu0 0
    %120 = vmatpush1.bf16.msra.mxu0 0
    %121 = vmatprep.subr.bf16.mxu0 0
    %122 = vmatpush1.bf16.msra.mxu0 0
    %123 = vmatprep.subr.bf16.mxu0 0
    %124 = vmatpush1.bf16.msra.mxu0 %v104
    %125 = vmatprep.subr.bf16.mxu0 0
    %126 = vmatpush1.bf16.msra.mxu0 %v103
    %127 = vmatprep.subr.bf16.mxu0 0
    %128 = vmatpush2.bf16.msra.mxu0 0
    %129 = vmatprep.subr.bf16.mxu0 0
    %130 = vmatpush2.bf16.msra.mxu0 0
    %131 = vmatprep.subr.bf16.mxu0 0
    %132 = vmatpush2.bf16.msra.mxu0 0
    %133 = vmatprep.subr.bf16.mxu0 0
    %134 = vmatpush2.bf16.msra.mxu0 0
    %135 = vmatprep.subr.bf16.mxu0 0
    %136 = vmatpush2.bf16.msra.mxu0 0
    %137 = vmatprep.subr.bf16.mxu0 0
    %138 = vmatpush2.bf16.msra.mxu0 0
    %139 = vmatprep.subr.bf16.mxu0 0
    %140 = vmatpush2.bf16.msra.mxu0 0
    %141 = vmatprep.subr.bf16.mxu0 0
    %142 = vmatpush2.bf16.msra.mxu0 0
    %143 = vmatprep.mubr.bf16.mxu0 0
    %144 = vmatmul.mubr.bf16.gmra.mxu0 %v109
    %v145 = vpop.f32.mrf.mxu0
    %v146 = vadd.f32 %v88, %v145
    %v147 = vpop.f32.mrf.mxu0
    %v148 = vpop.f32.mrf.mxu0
    %v149 = vadd.f32 %v88, %v148
    %v150 = vpop.f32.mrf.mxu0
    %151 = vdwg.mxu0
    %v152 = vmax.f32 %v146, 0.0
    %v153 = vmax.f32 %v149, 0.0
    %v154 = vpack.c.bf16 %v153, %v152
    %v155 = vld [vmem:[%s3] sm:$0xf]
    %v156 = vld [vmem:[%s3 + $0x4] sm:$0xf]
    %v157 = vld [vmem:[%s3 + $0x8] sm:$0xf]
    %v158 = vld [vmem:[%s3 + $0xc] sm:$0xf]
    %v159 = vld [vmem:[%s3 + $0x10] sm:$0xf]
    %v160 = vld [vmem:[%s3 + $0x14] sm:$0xf]
    %v161 = vld [vmem:[%s3 + $0x18] sm:$0xf]
    %v162 = vld [vmem:[%s3 + $0x1c] sm:$0xf]
    %v163 = vld [vmem:[#allocation8] sm:$0x1]
    %v165 = vlaneseq
    %v166 = vshrl.u32 %v165, 7
    %v167 = vsub.s32 0, %v166
    %v168 = vrot.slane %v163, %v167
    %v178 = vunpack.c.l.b16 %v155
    %v179 = vunpack.c.l.b16 %v156
    %v180 = vunpack.c.l.b16 %v157
    %v181 = vunpack.c.l.b16 %v158
    %v182 = vunpack.c.l.b16 %v159
    %v183 = vunpack.c.l.b16 %v160
    %v184 = vunpack.c.l.b16 %v161
    %v185 = vunpack.c.l.b16 %v162
    %v186 = vpack.c.b16 %v179, %v178
    %v187 = vpack.c.b16 %v181, %v180
    %v188 = vpack.c.b16 %v183, %v182
    %v189 = vpack.c.b16 %v185, %v184
    %vm194 = vcmask 523264
    %v196 = vsel %vm194, %v154, 0
    %198 = vmatprep.subr.bf16.mxu0 0
    %199 = vmatpush1.bf16.msra.mxu0 0
    %200 = vmatprep.subr.bf16.mxu0 0
    %201 = vmatpush1.bf16.msra.mxu0 0
    %202 = vmatprep.subr.bf16.mxu0 0
    %203 = vmatpush1.bf16.msra.mxu0 0
    %204 = vmatprep.subr.bf16.mxu0 0
    %205 = vmatpush1.bf16.msra.mxu0 0
    %206 = vmatprep.subr.bf16.mxu0 0
    %207 = vmatpush1.bf16.msra.mxu0 %v189
    %208 = vmatprep.subr.bf16.mxu0 0
    %209 = vmatpush1.bf16.msra.mxu0 %v188
    %210 = vmatprep.subr.bf16.mxu0 0
    %211 = vmatpush1.bf16.msra.mxu0 %v187
    %212 = vmatprep.subr.bf16.mxu0 0
    %213 = vmatpush1.bf16.msra.mxu0 %v186
    %214 = vmatprep.subr.bf16.mxu0 0
    %215 = vmatpush2.bf16.msra.mxu0 0
    %216 = vmatprep.subr.bf16.mxu0 0
    %217 = vmatpush2.bf16.msra.mxu0 0
    %218 = vmatprep.subr.bf16.mxu0 0
    %219 = vmatpush2.bf16.msra.mxu0 0
    %220 = vmatprep.subr.bf16.mxu0 0
    %221 = vmatpush2.bf16.msra.mxu0 0
    %222 = vmatprep.subr.bf16.mxu0 0
    %223 = vmatpush2.bf16.msra.mxu0 0
    %224 = vmatprep.subr.bf16.mxu0 0
    %225 = vmatpush2.bf16.msra.mxu0 0
    %226 = vmatprep.subr.bf16.mxu0 0
    %227 = vmatpush2.bf16.msra.mxu0 0
    %228 = vmatprep.subr.bf16.mxu0 0
    %229 = vmatpush2.bf16.msra.mxu0 0
    %230 = vmatprep.mubr.bf16.mxu0 0
    %231 = vmatmul.mubr.bf16.gmra.mxu0 %v196
    %v232 = vpop.f32.mrf.mxu0
    %v233 = vadd.f32 %v168, %v232
    %v234 = vpop.f32.mrf.mxu0
    %v235 = vpop.f32.mrf.mxu0
    %v236 = vadd.f32 %v168, %v235
    %v237 = vpop.f32.mrf.mxu0
    %238 = vdwg.mxu0
    %v239 = vtanh.pop %v233
    %v240 = vtanh.pop %v236
    %v241 = vld [vmem:[%s5] sm:$0x1]
    %v243 = vlaneseq
    %v244 = vshrl.u32 %v243, 7
    %v245 = vsub.s32 0, %v244
    %v246 = vrot.slane %v241, %v245
    %247 = vrot.lane.b32.xlu0 %v246, 48
    %v248 = vpop.permute.xlu0 %247
    %v250 = vmul.f32 %v239, %v248
    %v251 = vmul.f32 %v240, %v248
    %254 = vrot.lane.b32.xlu0 %v250, 80
    %v255 = vpop.permute.xlu0 %254
    %256 = vrot.lane.b32.xlu0 %v251, 80
    %v257 = vpop.permute.xlu0 %256
    %vm260 = vcmask 130048
    %v261 = vsel %vm260, %v255, 0.0
    %262 = vadd.xlane.f32.xlu0 %v261
    %v263 = vpop.xlane.xlu0 %262
    %v264 = vsel %vm260, %v257, 0.0
    %265 = vadd.xlane.f32.xlu0 %v264
    %v266 = vpop.xlane.xlu0 %265
    %v267 = vld [vmem:[#allocation2] sm:$0x1]
    %v269 = vlaneseq
    %v270 = vshrl.u32 %v269, 7
    %v271 = vsub.s32 0, %v270
    %v272 = vrot.slane %v267, %v271
    %273 = vset.pattern.permute.xlu0 0
    %274 = vperm.xlu0 %273, %v272
    %v275 = vpop.permute.xlu0 %274
    %v277 = vadd.f32 %v263, %v275
    %v278 = vadd.f32 %v266, %v275
    %v281 = vlaneseq
    %v282 = vand.u32 %v281, 127
    %v283 = vlaneseq
    %v284 = vshrl.u32 %v283, 7
    %v285 = vsub.s32 %v282, %v284
    %v286 = vrot.slane %v277, %v285
    %v287 = vlaneseq
    %v288 = vshrl.u32 %v287, 7
    %v289 = vsub.s32 %v282, %v288
    %v290 = vrot.slane %v278, %v289
    %vm291 = vcmask 1041409
    %v292 = vsel %vm291, %v290, %v286
    %vm294 = vcmask 58368
    %v295 = vsel %vm294, %v292, -inf
    %296 = vmax.xlane.f32.xlu0 %v295
    %v297 = vpop.xlane.xlu0 %296
    %v299 = vlaneseq
    %v300 = vshrl.u32 %v299, 7
    %v301 = vsub.s32 0, %v300
    %v302 = vrot.slane %v297, %v301
    %v303 = vlaneseq
    %v304 = vshrl.u32 %v303, 7
    %v305 = vsub.s32 1, %v304
    %v306 = vrot.slane %v297, %v305
    %v309 = vsub.f32 %v277, %v302
    %v310 = vsub.f32 %v278, %v306
    %v311 = vmul.f32 %v309, 1.442695
    %v312 = vpow.pop %v311
    %v313 = vmul.f32 %v310, 1.442695
    %v314 = vpow.pop %v313
    %317 = vset.pattern.permute.xlu0 0
    %318 = vperm.xlu0 %317, %v312
    %v319 = vpop.permute.xlu0 %318
    %320 = vset.pattern.permute.xlu0 0
    %321 = vperm.xlu0 %320, %v314
    %v322 = vpop.permute.xlu0 %321
    %v323 = vlaneseq
    %v324 = vshrl.u32 %v323, 7
    %v325 = vsub.s32 %v282, %v324
    %v326 = vrot.slane %v319, %v325
    %v327 = vlaneseq
    %v328 = vshrl.u32 %v327, 7
    %v329 = vsub.s32 %v282, %v328
    %v330 = vrot.slane %v322, %v329
    %v331 = vsel %vm291, %v330, %v326
    %v333 = vsel %vm294, %v331, 0.0
    %334 = vadd.xlane.f32.xlu0 %v333
    %v335 = vpop.xlane.xlu0 %334
    %v336 = vrcp.pop %v335
    %v338 = vlaneseq
    %v339 = vshrl.u32 %v338, 7
    %v340 = vsub.s32 0, %v339
    %v341 = vrot.slane %v336, %v340
    %v342 = vlaneseq
    %v343 = vshrl.u32 %v342, 7
    %v344 = vsub.s32 1, %v343
    %v345 = vrot.slane %v336, %v344
    %v348 = vmul.f32 %v312, %v341
    %v349 = vmul.f32 %v314, %v345
    %351 = vset.pattern.permute.xlu0 0
    %352 = vperm.xlu0 %351, %v348
    %v353 = vpop.permute.xlu0 %352
    %356 = vset.pattern.permute.xlu0 0
    %357 = vperm.xlu0 %356, %v349
    %v358 = vpop.permute.xlu0 %357
    %v360 = vmul.f32 %v353, %v233
    %v361 = vmul.f32 %v358, %v236
    %vm362 = vcmask 392192
    %v363 = vsel %vm362, %v360, 0.0
    %v364 = vrot.slane %v363, 4
    %v365 = vadd.f32 %v363, %v364
    %v366 = vrot.slane %v365, 2
    %v367 = vadd.f32 %v365, %v366
    %v368 = vrot.slane %v367, 1
    %v369 = vadd.f32 %v367, %v368
    %v370 = vsel %vm362, %v361, 0.0
    %v371 = vrot.slane %v370, 4
    %v372 = vadd.f32 %v370, %v371
    %v373 = vrot.slane %v372, 2
    %v374 = vadd.f32 %v372, %v373
    %v375 = vrot.slane %v374, 1
    %v376 = vadd.f32 %v374, %v375
    %v377 = vpack.c.bf16 %v369, %v369
    %v378 = vpack.c.bf16 %v376, %v376
    %v379 = vld [vmem:[%s7] sm:$0xf]
    %v380 = vld [vmem:[%s7 + $0x4] sm:$0xf]
    %v381 = vld [vmem:[%s7 + $0x8] sm:$0xf]
    %v382 = vld [vmem:[%s7 + $0xc] sm:$0xf]
    %v383 = vld [vmem:[%s7 + $0x10] sm:$0xf]
    %v384 = vld [vmem:[%s7 + $0x14] sm:$0xf]
    %v385 = vld [vmem:[%s8] sm:$0x1]
    %v387 = vlaneseq
    %v388 = vshrl.u32 %v387, 7
    %v389 = vsub.s32 0, %v388
    %v390 = vrot.slane %v385, %v389
    %v394 = vunpack.c.l.b16 %v377
    %v395 = vunpack.c.l.b16 %v378
    %v396 = vsel %vm291, %v395, %v394
    %v397 = vpack.c.b16 %v396, %v396
    %v404 = vunpack.c.l.b16 %v379
    %v405 = vunpack.c.l.b16 %v380
    %v406 = vunpack.c.l.b16 %v381
    %v407 = vunpack.c.l.b16 %v382
    %v408 = vunpack.c.l.b16 %v383
    %v409 = vunpack.c.l.b16 %v384
    %v410 = vpack.c.b16 %v405, %v404
    %v411 = vpack.c.b16 %v407, %v406
    %v412 = vpack.c.b16 %v409, %v408
    %v417 = vsel %vm362, %v397, 0
    %419 = vmatprep.subr.bf16.mxu0 0
    %420 = vmatpush1.bf16.msra.mxu0 0
    %421 = vmatprep.subr.bf16.mxu0 0
    %422 = vmatpush1.bf16.msra.mxu0 0
    %423 = vmatprep.subr.bf16.mxu0 0
    %424 = vmatpush1.bf16.msra.mxu0 0
    %425 = vmatprep.subr.bf16.mxu0 0
    %426 = vmatpush1.bf16.msra.mxu0 0
    %427 = vmatprep.subr.bf16.mxu0 0
    %428 = vmatpush1.bf16.msra.mxu0 0
    %429 = vmatprep.subr.bf16.mxu0 0
    %430 = vmatpush1.bf16.msra.mxu0 %v412
    %431 = vmatprep.subr.bf16.mxu0 0
    %432 = vmatpush1.bf16.msra.mxu0 %v411
    %433 = vmatprep.subr.bf16.mxu0 0
    %434 = vmatpush1.bf16.msra.mxu0 %v410
    %435 = vmatprep.subr.bf16.mxu0 0
    %436 = vmatpush2.bf16.msra.mxu0 0
    %437 = vmatprep.subr.bf16.mxu0 0
    %438 = vmatpush2.bf16.msra.mxu0 0
    %439 = vmatprep.subr.bf16.mxu0 0
    %440 = vmatpush2.bf16.msra.mxu0 0
    %441 = vmatprep.subr.bf16.mxu0 0
    %442 = vmatpush2.bf16.msra.mxu0 0
    %443 = vmatprep.subr.bf16.mxu0 0
    %444 = vmatpush2.bf16.msra.mxu0 0
    %445 = vmatprep.subr.bf16.mxu0 0
    %446 = vmatpush2.bf16.msra.mxu0 0
    %447 = vmatprep.subr.bf16.mxu0 0
    %448 = vmatpush2.bf16.msra.mxu0 0
    %449 = vmatprep.subr.bf16.mxu0 0
    %450 = vmatpush2.bf16.msra.mxu0 0
    %451 = vmatprep.mubr.bf16.mxu0 0
    %452 = vmatmul.mubr.bf16.gmra.mxu0 %v417
    %v453 = vpop.f32.mrf.mxu0
    %v454 = vadd.f32 %v390, %v453
    %v455 = vpop.f32.mrf.mxu0
    %v456 = vpop.f32.mrf.mxu0
    %v457 = vpop.f32.mrf.mxu0
    %458 = vdwg.mxu0
    %v459 = vadd.s32 %v282, 4294967292
    %v460 = vlaneseq
    %v461 = vshrl.u32 %v460, 7
    %v462 = vsub.s32 %v459, %v461
    %v463 = vrot.slane %v353, %v462
    %v464 = vlaneseq
    %v465 = vshrl.u32 %v464, 7
    %v466 = vsub.s32 %v459, %v465
    %v467 = vrot.slane %v358, %v466
    %v468 = vsel %vm291, %v467, %v463
    %vm470 = vcmask 31744
    %v471 = vsel %vm470, %v454, %v468
    %vm472 = vcmask 91136
    %473 = vst.msk [vmem:[#allocation9] sm:$0x3] %vm472, %v471
    // Predicated region
    $region50: #{tpu_custom_call.1} parent=1 // pred_check
      _
    $region51: #{tpu_custom_call.1} parent=1 // pred_check_branch
      %475 = sbr.rel (0) target = $region53
    $region52: #{tpu_custom_call.1} parent=1 // pred_region
      %s477 = ssub.s32 32, 32
      %478 = vsyncadd [#allocation5], %s477
      %s480 = sshll.u32 [#allocation9], 4
      %s481 = int_to_ptr.vmem [resolvable:$true] %s480
      %483 = dma.vmem_to_hbm [thread:$0]  %s481, 32, %s9, [#allocation5]
    $region53: #{tpu_custom_call.1} parent=1 // pred_fallthru
      _
    // Predicated region
    $region54: #{tpu_custom_call.1} parent=1 // pred_check
      _
    $region55: #{tpu_custom_call.1} parent=1 // pred_check_branch
      %485 = sbr.rel (0) target = $region57
    $region56: #{tpu_custom_call.1} parent=1 // pred_region
      %486 = dma.done [#allocation5], 32
    $region57: #{tpu_custom_call.1} parent=1 // pred_fallthru
      _
    %487 = vsyncpa [#allocation4], 1
    %488 = vsyncpa [#allocation7], 1
    %489 = vsyncpa [#allocation5], 1

</llo_original>
